<compile_context>
chip_gen: v5e
topology: v5e:2x2
jax: 0.10.0
libtpu: 0.0.40
codegen_flags: <defaults>
</compile_context>

<pallas_src>
import jax
import jax.numpy as jnp
from jax.experimental import pallas as pl
from jax.experimental.pallas import tpu as pltpu


def _copy_kernel(x_ref, o_ref):
    # Whole-tile pass-through in VMEM.
    o_ref[...] = x_ref[...]


# Keep well under the v7x scoped-VMEM default (32 MiB): with in+out tiles
# double-buffered we budget ~4 MiB per tile.
_SMALL_TILE_BYTES = 4 << 20


def _pick_tile_rows(rows: int, cols: int, itemsize: int) -> int:
    """Largest lane-dense row-tile that keeps in+out buffers small in VMEM."""
    if rows * cols * itemsize <= _SMALL_TILE_BYTES:
        return rows  # whole array: single block, no grid, no per-step overhead
    # Prefer big tiles (>=512 rows) per v5e/v6e measurements; must divide rows.
    for cand in (1024, 512, 256, 128, 64, 32, 16, 8):
        if rows % cand == 0 and cand * cols * itemsize <= _SMALL_TILE_BYTES:
            return cand
    return rows  # fallback: whole array (tiny row counts / odd shapes)


def _identity_pallas(x: jax.Array) -> jax.Array:
    """Identity copy through VMEM with in/out buffer aliasing.

    Placeholder / plumbing demo only — the real Query_Encoder forward performs
    no compute and launches no kernel.
    """
    rows, cols = x.shape
    tile_rows = _pick_tile_rows(rows, cols, x.dtype.itemsize)

    if tile_rows == rows:
        # Small array: one whole-array block, no grid.
        return pl.pallas_call(
            _copy_kernel,
            out_shape=jax.ShapeDtypeStruct((rows, cols), x.dtype),
            in_specs=[pl.BlockSpec((rows, cols), lambda: (0, 0))],
            out_specs=pl.BlockSpec((rows, cols), lambda: (0, 0)),
            input_output_aliases={0: 0},
        )(x)

    # Large array: lane-dense row tiles, double-buffered pipeline, parallel axis.
    grid = (rows // tile_rows,)
    return pl.pallas_call(
        _copy_kernel,
        out_shape=jax.ShapeDtypeStruct((rows, cols), x.dtype),
        grid=grid,
        in_specs=[pl.BlockSpec((tile_rows, cols), lambda i: (i, 0))],
        out_specs=pl.BlockSpec((tile_rows, cols), lambda i: (i, 0)),
        input_output_aliases={0: 0},
        compiler_params=pltpu.CompilerParams(
            dimension_semantics=("parallel",)
        ),
    )(x)


# Donate the input at the jit boundary so the pallas-level aliasing actually
# reuses the HBM buffer instead of forcing a defensive copy.
_identity_pallas_jit = jax.jit(_identity_pallas, donate_argnums=(0,))


class QueryEncoder:
    """JAX/Pallas mirror of the (empty) PyTorch Query_Encoder module."""

    def __init__(self):
        # No parameters in the original module.
        pass

    def forward(self):
        # Exact semantics of the PyTorch forward: takes nothing, returns None.
        # No kernel is launched here — the fastest copy is no copy.
        return None

    __call__ = forward


if __name__ == "__main__":
    # The module's forward takes no inputs; we still build a small deterministic
    # array to exercise the placeholder identity kernel once on TPU.
    key = jax.random.PRNGKey(0)
    x = jax.random.normal(key, (16, 256), dtype=jnp.float32)  # lane-dense cols

    # Run the placeholder Pallas kernel (x is donated / aliased to the output).
    y = _identity_pallas_jit(x)
    jax.block_until_ready(y)

    # x was donated, so verify bit-exactly against a freshly regenerated copy.
    expected = jax.random.normal(jax.random.PRNGKey(0), (16, 256), dtype=jnp.float32)
    assert jnp.array_equal(y, expected), "identity kernel mismatch"

    # Mirror the actual module semantics: forward() -> None, no kernel launch.
    enc = QueryEncoder()
    out = enc.forward()
    assert out is None

    print("KERNEL_OK")
</pallas_src>

<mosaic_0001>
module attributes {stable_mosaic.version = 11 : i64} {
  func.func @_copy_kernel(%arg0: memref<16x256xf32, #tpu.memory_space<vmem>>, %arg1: memref<16x256xf32, #tpu.memory_space<vmem>>) attributes {dimension_semantics = [], scalar_prefetch = 0 : i64, scratch_operands = 0 : i64, tpu.core_type = #tpu.core_type<tc>} {
    %c0 = arith.constant 0 : index
    %c0_0 = arith.constant 0 : index
    %0 = vector.load %arg0[%c0, %c0_0] : memref<16x256xf32, #tpu.memory_space<vmem>>, vector<16x256xf32>
    %c0_1 = arith.constant 0 : index
    %c0_2 = arith.constant 0 : index
    %1 = vector.load %arg1[%c0_1, %c0_2] : memref<16x256xf32, #tpu.memory_space<vmem>>, vector<16x256xf32>
    tpu.vector_store %arg1[%c0_1, %c0_2], %0 {strides = array<i32>} : memref<16x256xf32, #tpu.memory_space<vmem>>, vector<16x256xf32>,
    return
  }
}

</mosaic_0001>

<llo_original>
// kernel: _identity_pallas.1
$region0: #{_identity_pallas.1}
  #allocation0 [shape = 'u32[]', space=smem, size = 0x4, offset = 0x4, fixed_abs, tag = 'smem constant byte address 0x4 - core index']
  #allocation1 [shape = 'u32[72,128]{1,0:T(1,128)}', space=vmem, size = 0x9000, scoped, tag = 'internal scratch']
  %s0 = inlined_call_operand.hbm [shape: f32[16,256], index: 0, kind: input, shape index: {}, may-alias: {0,1}]
  %s1 = inlined_call_operand.hbm [shape: f32[16,256], index: 1, kind: output, shape index: {}, may-alias: {0,1}]
  %s2 = sld [smem:[#allocation0]]
  $region18: #{_identity_pallas.1} parent=0
    _
  %s4 = ssub.s32 1, %s2
  %s5 = scalar_select 0, %s4, %s2
  $region1: #{_identity_pallas.1} parent=0
    #allocation2 [shape = 'u8[16384]{0}', space=vmem, size = 0x4000, scoped, tag = 'input window, operand 0, single buffered']
    #allocation3 [shape = 's32[1]{0}', space=sflag, size = 0x4, scoped, tag = 'scoped memory for _identity_pallas.1']
    #allocation4 [shape = 's32[1]{0}', space=sflag, size = 0x4, scoped, tag = 'scoped memory for _identity_pallas.1']
    #allocation5 [shape = 'u8[16384]{0}', space=vmem, size = 0x4000, scoped, tag = 'output window, operand 0, single buffered']
    %6 = vsyncpa [#allocation3], 0
    %7 = vsyncpa [#allocation4], 0
    // Predicated region
    $region2: #{_identity_pallas.1} parent=1 // pred_check
      _
    $region3: #{_identity_pallas.1} parent=1 // pred_check_branch
      %9 = sbr.rel (0) target = $region5
    $region4: #{_identity_pallas.1} parent=1 // pred_region
      %11 = vsyncadd [#allocation3], 0
      %s12 = sshll.u32 %s0, 4
      %s13 = int_to_ptr.hbm [resolvable:$true] %s12
      %s14 = sshll.u32 [#allocation2], 4
      %s15 = int_to_ptr.vmem [resolvable:$true] %s14
      %20 = dma.hbm_to_vmem [thread:$0]  %s13, 512, %s15, [#allocation3], 256, 256, 16
    $region5: #{_identity_pallas.1} parent=1 // pred_fallthru
      _
    // Predicated region
    $region6: #{_identity_pallas.1} parent=1 // pred_check
      _
    $region7: #{_identity_pallas.1} parent=1 // pred_check_branch
      %22 = sbr.rel (0) target = $region9
    $region8: #{_identity_pallas.1} parent=1 // pred_region
      %24 = dma.done [#allocation3], 512
    $region9: #{_identity_pallas.1} parent=1 // pred_fallthru
      _
    %v25 = vld [vmem:[#allocation2] sm:$0xff]
    %v26 = vld [vmem:[#allocation2 + $0x8] sm:$0xff]
    %v27 = vld [vmem:[#allocation2 + $0x10] sm:$0xff]
    %v28 = vld [vmem:[#allocation2 + $0x18] sm:$0xff]
    %29 = vst [vmem:[#allocation5] sm:$0xff] %v25
    %30 = vst [vmem:[#allocation5 + $0x8] sm:$0xff] %v26
    %31 = vst [vmem:[#allocation5 + $0x10] sm:$0xff] %v27
    %32 = vst [vmem:[#allocation5 + $0x18] sm:$0xff] %v28
    // Predicated region
    $region10: #{_identity_pallas.1} parent=1 // pred_check
      _
    $region11: #{_identity_pallas.1} parent=1 // pred_check_branch
      %34 = sbr.rel (0) target = $region13
    $region12: #{_identity_pallas.1} parent=1 // pred_region
      %36 = vsyncadd [#allocation4], 0
      %s37 = sshll.u32 [#allocation5], 4
      %s38 = int_to_ptr.vmem [resolvable:$true] %s37
      %s39 = sshll.u32 %s1, 4
      %s40 = int_to_ptr.hbm [resolvable:$true] %s39
      %45 = dma.vmem_to_hbm [thread:$0]  %s38, 512, %s40, [#allocation4], 256, 256, 16
    $region13: #{_identity_pallas.1} parent=1 // pred_fallthru
      _
    // Predicated region
    $region14: #{_identity_pallas.1} parent=1 // pred_check
      _
    $region15: #{_identity_pallas.1} parent=1 // pred_check_branch
      %47 = sbr.rel (0) target = $region17
    $region16: #{_identity_pallas.1} parent=1 // pred_region
      %49 = dma.done [#allocation4], 512
    $region17: #{_identity_pallas.1} parent=1 // pred_fallthru
      _
    %50 = vsyncpa [#allocation3], 1
    %51 = vsyncpa [#allocation4], 1

</llo_original>
